<compile_context>
chip_gen: v6e
topology: v6e:2x2x1
jax: 0.10.0
libtpu: 0.0.40
codegen_flags: <defaults>
</compile_context>

<pallas_src>
import numpy as np
import jax
import jax.numpy as jnp
from jax import lax
from jax.experimental import pallas as pl
from jax.experimental.pallas import tpu as pltpu

PI = float(np.pi)
HALF_PI = PI / 2.0
INV_PI = 1.0 / PI
TWO_OVER_PI = 2.0 / PI

_CHUNK = 16                 # sublanes processed per inner-loop iteration
_MAX_TILE_SUBLANES = 256    # cap on BlockSpec sublane extent (VMEM-safe v5e..v7x)


def _cdiv(a, b):
  return -(-a // b)


def _round_up(x, m):
  return _cdiv(x, m) * m


# ---------------------------------------------------------------------------
# In-kernel math helpers (only ops with guaranteed Mosaic lowering).
# ---------------------------------------------------------------------------
def _recip(x, refine=False):
  """1/x via EUP approx reciprocal, optionally one Newton refinement step."""
  r = pl.reciprocal(x, approx=True)
  if refine:
    r = r * (2.0 - x * r)
  return r


def _atan(x):
  """float32 arctangent (Cephes range reduction + odd polynomial).

  One shared approx reciprocal replaces the two full divides of the naive
  branch form; both range-reduction branches fold into selects.
  """
  sign = jnp.where(x < 0.0, -1.0, 1.0)
  ax = jnp.abs(x)
  big = ax > 2.414213562373095        # tan(3*pi/8)
  mid = ax > 0.4142135623730950       # tan(pi/8)   (big implies mid)
  num = jnp.where(big, -1.0, ax - 1.0)
  den = jnp.where(big, ax, ax + 1.0)  # >= 1 everywhere -> safe reciprocal
  t = jnp.where(mid, num * _recip(den), ax)
  y0 = jnp.where(big, HALF_PI, jnp.where(mid, 0.25 * PI, 0.0))
  z = t * t
  p = ((((8.05374449538e-2 * z - 1.38776856032e-1) * z
         + 1.99777106478e-1) * z - 3.33329491539e-1) * z) * t + t
  return sign * (y0 + p)


def _acos(t):
  """arccos on [-1, 1]: acos(t) = pi/2 - atan(t * rsqrt(1 - t^2))."""
  s = lax.rsqrt(jnp.maximum(1.0 - t * t, 1e-30))
  return HALF_PI - _atan(t * s)


# ---------------------------------------------------------------------------
# Pallas kernel.  grid = (spatial_tiles, batch); batch is the innermost axis.
# ---------------------------------------------------------------------------
def grid_gen_kernel(u_ref, in1_ref, g3d_ref, out_ref):
  b = pl.program_id(1)
  u = u_ref[b]                        # scalar rotation for this batch (SMEM)
  tile_sublanes = in1_ref.shape[2]    # static
  nchunks = tile_sublanes // _CHUNK   # static

  def compute_chunk(ci):
    s0 = pl.multiple_of(ci * _CHUNK, _CHUNK)
    sl = pl.ds(s0, _CHUNK)

    g0 = g3d_ref[0, sl, :]
    g1 = g3d_ref[1, sl, :]
    g2 = g3d_ref[2, sl, :]
    g3 = g3d_ref[3, sl, :]

    def dot4(base):
      return (g0 * in1_ref[0, base + 0, sl, :]
              + g1 * in1_ref[0, base + 1, sl, :]
              + g2 * in1_ref[0, base + 2, sl, :]
              + g3 * in1_ref[0, base + 3, sl, :])

    x = dot4(0)
    y = dot4(4)
    z = dot4(8)

    r = jnp.sqrt(x * x + y * y + z * z) + 1e-5
    # Refined reciprocal for z/r: acos is pole-sensitive near |z/r| ~= 1.
    zr = jnp.clip(z * _recip(r, refine=True), -1.0, 1.0)
    theta = _acos(zr) * TWO_OVER_PI - 1.0

    # phi = atan(y/(x+1e-5)) + pi * (x<0) * ((y>=0) - (y<0)), then / pi
    quad = jnp.where(x < 0.0, jnp.where(y >= 0.0, 1.0, -1.0), 0.0)
    phi = (_atan(y * _recip(x + 1e-5)) + PI * quad) * INV_PI

    # output1 = atan(tan(pi/2 * (phi + u))) / (pi/2): exact phase wrap onto
    # (-pi/2, pi/2], implemented as a modular reduction (matches the reference
    # everywhere except exactly at the tan pole, which is measure-zero).
    a = HALF_PI * (phi + u)
    wrapped = a - PI * jnp.floor(a * INV_PI + 0.5)

    out_ref[0, 0, sl, :] = theta
    out_ref[0, 1, sl, :] = wrapped * TWO_OVER_PI

  if nchunks == 1:
    compute_chunk(0)
  else:
    def body(ci, carry):
      compute_chunk(ci)
      return carry
    lax.fori_loop(0, nchunks, body, 0)


# ---------------------------------------------------------------------------
# Module-equivalent constant setup (matches DenseAffine3DGridGen_rotate.__init__).
# ---------------------------------------------------------------------------
def make_grid3d(height, width):
  grid = np.zeros([height, width, 3], dtype=np.float32)
  grid[:, :, 0] = np.expand_dims(
      np.repeat(np.expand_dims(np.arange(-1, 1, 2.0 / height), 0),
                repeats=width, axis=0).T, 0)
  grid[:, :, 1] = np.expand_dims(
      np.repeat(np.expand_dims(np.arange(-1, 1, 2.0 / width), 0),
                repeats=height, axis=0), 0)
  grid[:, :, 2] = np.ones([height, width])
  theta = grid[:, :, 0] * np.pi / 2 + np.pi / 2
  phi = grid[:, :, 1] * np.pi
  grid3d = np.zeros([height, width, 4], dtype=np.float32)
  grid3d[:, :, 0] = np.sin(theta) * np.cos(phi)
  grid3d[:, :, 1] = np.sin(theta) * np.sin(phi)
  grid3d[:, :, 2] = np.cos(theta)
  grid3d[:, :, 3] = grid[:, :, 2]
  return grid3d.astype(np.float32)


# ---------------------------------------------------------------------------
# Wrapper: channel-last (B,H,W,12)/(B,) -> (B,H,W,2), matching the module.
# ---------------------------------------------------------------------------
@jax.jit
def dense_affine_3d_grid_gen_rotate(input1, input2, grid3d):
  B, H, W, C = input1.shape
  assert C == 12
  N = H * W

  # Lane-dense spatial tiling: flatten H*W, view as (S, 128); pick a tile of at
  # most _MAX_TILE_SUBLANES sublanes (multiple of _CHUNK) minimizing padding.
  S = _cdiv(N, 128)
  ntiles = _cdiv(S, _MAX_TILE_SUBLANES)
  ts = _round_up(_cdiv(S, ntiles), _CHUNK)
  S_pad = ntiles * ts
  N_pad = S_pad * 128

  in1 = jnp.transpose(input1.astype(jnp.float32), (0, 3, 1, 2)).reshape(B, 12, N)
  g3d = jnp.transpose(grid3d.astype(jnp.float32), (2, 0, 1)).reshape(4, N)
  if N_pad != N:
    in1 = jnp.pad(in1, ((0, 0), (0, 0), (0, N_pad - N)))
    g3d = jnp.pad(g3d, ((0, 0), (0, N_pad - N)))
  in1 = in1.reshape(B, 12, S_pad, 128)
  g3d = g3d.reshape(4, S_pad, 128)
  u = input2.reshape(-1).astype(jnp.float32)

  out = pl.pallas_call(
      grid_gen_kernel,
      out_shape=jax.ShapeDtypeStruct((B, 2, S_pad, 128), jnp.float32),
      grid_spec=pltpu.PrefetchScalarGridSpec(
          num_scalar_prefetch=0,
          grid=(ntiles, B),                       # batch innermost -> grid3d tile
          in_specs=[                              # re-used without re-DMA
              pl.BlockSpec(memory_space=pltpu.MemorySpace.SMEM),      # u (B,)
              pl.BlockSpec((1, 12, ts, 128), lambda t, b: (b, 0, t, 0)),
              pl.BlockSpec((4, ts, 128), lambda t, b: (0, t, 0)),
          ],
          out_specs=pl.BlockSpec((1, 2, ts, 128), lambda t, b: (b, 0, t, 0)),
      ),
      compiler_params=pltpu.CompilerParams(
          dimension_semantics=("parallel", "parallel"),
          # Allow XLA to fuse the channel transpose / pad into the kernel's
          # input1 operand instead of writing a transposed copy back to HBM.
          allow_input_fusion=[False, True, False],
      ),
  )(u, in1, g3d)

  out = out.reshape(B, 2, N_pad)[:, :, :N].reshape(B, 2, H, W)
  return jnp.transpose(out, (0, 2, 3, 1))


# ---------------------------------------------------------------------------
# Pure-JAX reference (mirrors the PyTorch forward) for a sanity check.
# ---------------------------------------------------------------------------
def reference_forward(input1, input2, grid3d):
  B, H, W, _ = input1.shape
  g = jnp.broadcast_to(grid3d[None], (B, H, W, 4))
  x = jnp.sum(g * input1[..., 0:4], axis=3, keepdims=True)
  y = jnp.sum(g * input1[..., 4:8], axis=3, keepdims=True)
  z = jnp.sum(g * input1[..., 8:12], axis=3, keepdims=True)
  r = jnp.sqrt(x**2 + y**2 + z**2) + 1e-5
  theta = jnp.arccos(z / r) / (np.pi / 2) - 1
  phi = jnp.arctan(y / (x + 1e-5)) + np.pi * (x < 0).astype(jnp.float32) * (
      (y >= 0).astype(jnp.float32) - (y < 0).astype(jnp.float32))
  phi = phi / np.pi
  u = input2.reshape(B, 1, 1, 1)
  out1 = jnp.arctan(jnp.tan(np.pi / 2.0 * (phi + u))) / (np.pi / 2)
  return jnp.concatenate([theta, out1], axis=3)


if __name__ == "__main__":
  B, H, W = 2, 16, 16
  key = jax.random.PRNGKey(0)
  k1, k2 = jax.random.split(key)
  input1 = jax.random.normal(k1, (B, H, W, 12), dtype=jnp.float32)
  input2 = jax.random.uniform(k2, (B,), dtype=jnp.float32, minval=-0.5, maxval=0.5)
  grid3d = jnp.asarray(make_grid3d(H, W))

  out = dense_affine_3d_grid_gen_rotate(input1, input2, grid3d)
  out = jax.block_until_ready(out)

  ref = reference_forward(input1, input2, grid3d)
  max_err = float(jnp.max(jnp.abs(out - ref)))
  assert out.shape == (B, H, W, 2), out.shape
  assert max_err < 5e-3, f"max abs error {max_err}"
  print("KERNEL_OK")
</pallas_src>

<mosaic_0001>
module attributes {stable_mosaic.version = 11 : i64} {
  func.func @grid_gen_kernel(%arg0: i32, %arg1: i32, %arg2: memref<2xf32, #tpu.memory_space<smem>>, %arg3: memref<1x12x16x128xf32, #tpu.memory_space<vmem>>, %arg4: memref<4x16x128xf32, #tpu.memory_space<vmem>>, %arg5: memref<1x2x16x128xf32, #tpu.memory_space<vmem>>) attributes {dimension_semantics = [#tpu.dimension_semantics<parallel>, #tpu.dimension_semantics<parallel>], iteration_bounds = array<i64: 1, 2>, scalar_prefetch = 0 : i64, scratch_operands = 0 : i64, tpu.core_type = #tpu.core_type<tc>, window_params = [{transform_indices = @transform_0, window_bounds = array<i64: 2>}, {transform_indices = @transform_1, window_bounds = array<i64: 1, 12, 16, 128>}, {transform_indices = @transform_2, window_bounds = array<i64: 4, 16, 128>}, {transform_indices = @transform_3, window_bounds = array<i64: 1, 2, 16, 128>}]} {
    %0 = arith.index_cast %arg1 : i32 to index
    %1 = memref.load %arg2[%0] : memref<2xf32, #tpu.memory_space<smem>>
    %c0_i32 = arith.constant 0 : i32
    %2 = tpu.assume_multiple %c0_i32, 16 : i32
    %c0 = arith.constant 0 : index
    %3 = arith.index_cast %2 : i32 to index
    %c0_0 = arith.constant 0 : index
    %4 = vector.load %arg4[%c0, %3, %c0_0] : memref<4x16x128xf32, #tpu.memory_space<vmem>>, vector<1x16x128xf32>
    %5 = vector.shape_cast %4 : vector<1x16x128xf32> to vector<16x128xf32>
    %c1 = arith.constant 1 : index
    %6 = arith.index_cast %2 : i32 to index
    %c0_1 = arith.constant 0 : index
    %7 = vector.load %arg4[%c1, %6, %c0_1] : memref<4x16x128xf32, #tpu.memory_space<vmem>>, vector<1x16x128xf32>
    %8 = vector.shape_cast %7 : vector<1x16x128xf32> to vector<16x128xf32>
    %c2 = arith.constant 2 : index
    %9 = arith.index_cast %2 : i32 to index
    %c0_2 = arith.constant 0 : index
    %10 = vector.load %arg4[%c2, %9, %c0_2] : memref<4x16x128xf32, #tpu.memory_space<vmem>>, vector<1x16x128xf32>
    %11 = vector.shape_cast %10 : vector<1x16x128xf32> to vector<16x128xf32>
    %c3 = arith.constant 3 : index
    %12 = arith.index_cast %2 : i32 to index
    %c0_3 = arith.constant 0 : index
    %13 = vector.load %arg4[%c3, %12, %c0_3] : memref<4x16x128xf32, #tpu.memory_space<vmem>>, vector<1x16x128xf32>
    %14 = vector.shape_cast %13 : vector<1x16x128xf32> to vector<16x128xf32>
    %c0_4 = arith.constant 0 : index
    %c0_5 = arith.constant 0 : index
    %15 = arith.index_cast %2 : i32 to index
    %c0_6 = arith.constant 0 : index
    %16 = vector.load %arg3[%c0_4, %c0_5, %15, %c0_6] : memref<1x12x16x128xf32, #tpu.memory_space<vmem>>, vector<1x1x16x128xf32>
    %17 = vector.shape_cast %16 : vector<1x1x16x128xf32> to vector<16x128xf32>
    %18 = arith.mulf %5, %17 : vector<16x128xf32>
    %c0_7 = arith.constant 0 : index
    %c1_8 = arith.constant 1 : index
    %19 = arith.index_cast %2 : i32 to index
    %c0_9 = arith.constant 0 : index
    %20 = vector.load %arg3[%c0_7, %c1_8, %19, %c0_9] : memref<1x12x16x128xf32, #tpu.memory_space<vmem>>, vector<1x1x16x128xf32>
    %21 = vector.shape_cast %20 : vector<1x1x16x128xf32> to vector<16x128xf32>
    %22 = arith.mulf %8, %21 : vector<16x128xf32>
    %23 = arith.addf %18, %22 : vector<16x128xf32>
    %c0_10 = arith.constant 0 : index
    %c2_11 = arith.constant 2 : index
    %24 = arith.index_cast %2 : i32 to index
    %c0_12 = arith.constant 0 : index
    %25 = vector.load %arg3[%c0_10, %c2_11, %24, %c0_12] : memref<1x12x16x128xf32, #tpu.memory_space<vmem>>, vector<1x1x16x128xf32>
    %26 = vector.shape_cast %25 : vector<1x1x16x128xf32> to vector<16x128xf32>
    %27 = arith.mulf %11, %26 : vector<16x128xf32>
    %28 = arith.addf %23, %27 : vector<16x128xf32>
    %c0_13 = arith.constant 0 : index
    %c3_14 = arith.constant 3 : index
    %29 = arith.index_cast %2 : i32 to index
    %c0_15 = arith.constant 0 : index
    %30 = vector.load %arg3[%c0_13, %c3_14, %29, %c0_15] : memref<1x12x16x128xf32, #tpu.memory_space<vmem>>, vector<1x1x16x128xf32>
    %31 = vector.shape_cast %30 : vector<1x1x16x128xf32> to vector<16x128xf32>
    %32 = arith.mulf %14, %31 : vector<16x128xf32>
    %33 = arith.addf %28, %32 : vector<16x128xf32>
    %c0_16 = arith.constant 0 : index
    %c4 = arith.constant 4 : index
    %34 = arith.index_cast %2 : i32 to index
    %c0_17 = arith.constant 0 : index
    %35 = vector.load %arg3[%c0_16, %c4, %34, %c0_17] : memref<1x12x16x128xf32, #tpu.memory_space<vmem>>, vector<1x1x16x128xf32>
    %36 = vector.shape_cast %35 : vector<1x1x16x128xf32> to vector<16x128xf32>
    %37 = arith.mulf %5, %36 : vector<16x128xf32>
    %c0_18 = arith.constant 0 : index
    %c5 = arith.constant 5 : index
    %38 = arith.index_cast %2 : i32 to index
    %c0_19 = arith.constant 0 : index
    %39 = vector.load %arg3[%c0_18, %c5, %38, %c0_19] : memref<1x12x16x128xf32, #tpu.memory_space<vmem>>, vector<1x1x16x128xf32>
    %40 = vector.shape_cast %39 : vector<1x1x16x128xf32> to vector<16x128xf32>
    %41 = arith.mulf %8, %40 : vector<16x128xf32>
    %42 = arith.addf %37, %41 : vector<16x128xf32>
    %c0_20 = arith.constant 0 : index
    %c6 = arith.constant 6 : index
    %43 = arith.index_cast %2 : i32 to index
    %c0_21 = arith.constant 0 : index
    %44 = vector.load %arg3[%c0_20, %c6, %43, %c0_21] : memref<1x12x16x128xf32, #tpu.memory_space<vmem>>, vector<1x1x16x128xf32>
    %45 = vector.shape_cast %44 : vector<1x1x16x128xf32> to vector<16x128xf32>
    %46 = arith.mulf %11, %45 : vector<16x128xf32>
    %47 = arith.addf %42, %46 : vector<16x128xf32>
    %c0_22 = arith.constant 0 : index
    %c7 = arith.constant 7 : index
    %48 = arith.index_cast %2 : i32 to index
    %c0_23 = arith.constant 0 : index
    %49 = vector.load %arg3[%c0_22, %c7, %48, %c0_23] : memref<1x12x16x128xf32, #tpu.memory_space<vmem>>, vector<1x1x16x128xf32>
    %50 = vector.shape_cast %49 : vector<1x1x16x128xf32> to vector<16x128xf32>
    %51 = arith.mulf %14, %50 : vector<16x128xf32>
    %52 = arith.addf %47, %51 : vector<16x128xf32>
    %c0_24 = arith.constant 0 : index
    %c8 = arith.constant 8 : index
    %53 = arith.index_cast %2 : i32 to index
    %c0_25 = arith.constant 0 : index
    %54 = vector.load %arg3[%c0_24, %c8, %53, %c0_25] : memref<1x12x16x128xf32, #tpu.memory_space<vmem>>, vector<1x1x16x128xf32>
    %55 = vector.shape_cast %54 : vector<1x1x16x128xf32> to vector<16x128xf32>
    %56 = arith.mulf %5, %55 : vector<16x128xf32>
    %c0_26 = arith.constant 0 : index
    %c9 = arith.constant 9 : index
    %57 = arith.index_cast %2 : i32 to index
    %c0_27 = arith.constant 0 : index
    %58 = vector.load %arg3[%c0_26, %c9, %57, %c0_27] : memref<1x12x16x128xf32, #tpu.memory_space<vmem>>, vector<1x1x16x128xf32>
    %59 = vector.shape_cast %58 : vector<1x1x16x128xf32> to vector<16x128xf32>
    %60 = arith.mulf %8, %59 : vector<16x128xf32>
    %61 = arith.addf %56, %60 : vector<16x128xf32>
    %c0_28 = arith.constant 0 : index
    %c10 = arith.constant 10 : index
    %62 = arith.index_cast %2 : i32 to index
    %c0_29 = arith.constant 0 : index
    %63 = vector.load %arg3[%c0_28, %c10, %62, %c0_29] : memref<1x12x16x128xf32, #tpu.memory_space<vmem>>, vector<1x1x16x128xf32>
    %64 = vector.shape_cast %63 : vector<1x1x16x128xf32> to vector<16x128xf32>
    %65 = arith.mulf %11, %64 : vector<16x128xf32>
    %66 = arith.addf %61, %65 : vector<16x128xf32>
    %c0_30 = arith.constant 0 : index
    %c11 = arith.constant 11 : index
    %67 = arith.index_cast %2 : i32 to index
    %c0_31 = arith.constant 0 : index
    %68 = vector.load %arg3[%c0_30, %c11, %67, %c0_31] : memref<1x12x16x128xf32, #tpu.memory_space<vmem>>, vector<1x1x16x128xf32>
    %69 = vector.shape_cast %68 : vector<1x1x16x128xf32> to vector<16x128xf32>
    %70 = arith.mulf %14, %69 : vector<16x128xf32>
    %71 = arith.addf %66, %70 : vector<16x128xf32>
    %72 = arith.mulf %33, %33 : vector<16x128xf32>
    %73 = arith.mulf %52, %52 : vector<16x128xf32>
    %74 = arith.addf %72, %73 : vector<16x128xf32>
    %75 = arith.mulf %71, %71 : vector<16x128xf32>
    %76 = arith.addf %74, %75 : vector<16x128xf32>
    %77 = math.sqrt %76 : vector<16x128xf32>
    %cst = arith.constant 9.99999974E-6 : f32
    %78 = vector.broadcast %cst : f32 to vector<16x128xf32>
    %79 = arith.addf %77, %78 : vector<16x128xf32>
    %80 = tpu.reciprocal %79 {approx = true} : vector<16x128xf32> -> vector<16x128xf32>
    %81 = arith.mulf %79, %80 : vector<16x128xf32>
    %cst_32 = arith.constant 2.000000e+00 : f32
    %82 = vector.broadcast %cst_32 : f32 to vector<16x128xf32>
    %83 = arith.subf %82, %81 : vector<16x128xf32>
    %84 = arith.mulf %80, %83 : vector<16x128xf32>
    %85 = arith.mulf %71, %84 : vector<16x128xf32>
    %cst_33 = arith.constant -1.000000e+00 : f32
    %cst_34 = arith.constant 1.000000e+00 : f32
    %86 = vector.broadcast %cst_33 : f32 to vector<16x128xf32>
    %87 = arith.maximumf %86, %85 : vector<16x128xf32>
    %88 = vector.broadcast %cst_34 : f32 to vector<16x128xf32>
    %89 = arith.minimumf %88, %87 : vector<16x128xf32>
    %90 = arith.mulf %89, %89 : vector<16x128xf32>
    %cst_35 = arith.constant 1.000000e+00 : f32
    %91 = vector.broadcast %cst_35 : f32 to vector<16x128xf32>
    %92 = arith.subf %91, %90 : vector<16x128xf32>
    %cst_36 = arith.constant 1.000000e-30 : f32
    %93 = vector.broadcast %cst_36 : f32 to vector<16x128xf32>
    %94 = arith.maximumf %92, %93 : vector<16x128xf32>
    %95 = math.rsqrt %94 : vector<16x128xf32>
    %96 = arith.mulf %89, %95 : vector<16x128xf32>
    %cst_37 = arith.constant 0.000000e+00 : f32
    %97 = vector.broadcast %cst_37 : f32 to vector<16x128xf32>
    %98 = arith.cmpf olt, %96, %97 : vector<16x128xf32>
    %cst_38 = arith.constant -1.000000e+00 : f32
    %cst_39 = arith.constant 1.000000e+00 : f32
    %99 = vector.broadcast %cst_38 : f32 to vector<16x128xf32>
    %100 = vector.broadcast %cst_39 : f32 to vector<16x128xf32>
    %101 = arith.select %98, %99, %100 : vector<16x128xi1>, vector<16x128xf32>
    %102 = math.absf %96 : vector<16x128xf32>
    %cst_40 = arith.constant 2.41421366 : f32
    %103 = vector.broadcast %cst_40 : f32 to vector<16x128xf32>
    %104 = arith.cmpf ogt, %102, %103 : vector<16x128xf32>
    %cst_41 = arith.constant 0.414213568 : f32
    %105 = vector.broadcast %cst_41 : f32 to vector<16x128xf32>
    %106 = arith.cmpf ogt, %102, %105 : vector<16x128xf32>
    %cst_42 = arith.constant 1.000000e+00 : f32
    %107 = vector.broadcast %cst_42 : f32 to vector<16x128xf32>
    %108 = arith.subf %102, %107 : vector<16x128xf32>
    %cst_43 = arith.constant -1.000000e+00 : f32
    %109 = vector.broadcast %cst_43 : f32 to vector<16x128xf32>
    %110 = arith.select %104, %109, %108 : vector<16x128xi1>, vector<16x128xf32>
    %cst_44 = arith.constant 1.000000e+00 : f32
    %111 = vector.broadcast %cst_44 : f32 to vector<16x128xf32>
    %112 = arith.addf %102, %111 : vector<16x128xf32>
    %113 = arith.select %104, %102, %112 : vector<16x128xi1>, vector<16x128xf32>
    %114 = tpu.reciprocal %113 {approx = true} : vector<16x128xf32> -> vector<16x128xf32>
    %115 = arith.mulf %110, %114 : vector<16x128xf32>
    %116 = arith.select %106, %115, %102 : vector<16x128xi1>, vector<16x128xf32>
    %cst_45 = arith.constant 0.785398185 : f32
    %cst_46 = arith.constant 0.000000e+00 : f32
    %117 = vector.broadcast %cst_45 : f32 to vector<16x128xf32>
    %118 = vector.broadcast %cst_46 : f32 to vector<16x128xf32>
    %119 = arith.select %106, %117, %118 : vector<16x128xi1>, vector<16x128xf32>
    %cst_47 = arith.constant 1.57079637 : f32
    %120 = vector.broadcast %cst_47 : f32 to vector<16x128xf32>
    %121 = arith.select %104, %120, %119 : vector<16x128xi1>, vector<16x128xf32>
    %122 = arith.mulf %116, %116 : vector<16x128xf32>
    %cst_48 = arith.constant 0.0805374458 : f32
    %123 = vector.broadcast %cst_48 : f32 to vector<16x128xf32>
    %124 = arith.mulf %123, %122 : vector<16x128xf32>
    %cst_49 = arith.constant 0.138776854 : f32
    %125 = vector.broadcast %cst_49 : f32 to vector<16x128xf32>
    %126 = arith.subf %124, %125 : vector<16x128xf32>
    %127 = arith.mulf %126, %122 : vector<16x128xf32>
    %cst_50 = arith.constant 0.199777111 : f32
    %128 = vector.broadcast %cst_50 : f32 to vector<16x128xf32>
    %129 = arith.addf %127, %128 : vector<16x128xf32>
    %130 = arith.mulf %129, %122 : vector<16x128xf32>
    %cst_51 = arith.constant 0.333329499 : f32
    %131 = vector.broadcast %cst_51 : f32 to vector<16x128xf32>
    %132 = arith.subf %130, %131 : vector<16x128xf32>
    %133 = arith.mulf %132, %122 : vector<16x128xf32>
    %134 = arith.mulf %133, %116 : vector<16x128xf32>
    %135 = arith.addf %134, %116 : vector<16x128xf32>
    %136 = arith.addf %121, %135 : vector<16x128xf32>
    %137 = arith.mulf %101, %136 : vector<16x128xf32>
    %cst_52 = arith.constant 1.57079637 : f32
    %138 = vector.broadcast %cst_52 : f32 to vector<16x128xf32>
    %139 = arith.subf %138, %137 : vector<16x128xf32>
    %cst_53 = arith.constant 0.636619746 : f32
    %140 = vector.broadcast %cst_53 : f32 to vector<16x128xf32>
    %141 = arith.mulf %139, %140 : vector<16x128xf32>
    %cst_54 = arith.constant 1.000000e+00 : f32
    %142 = vector.broadcast %cst_54 : f32 to vector<16x128xf32>
    %143 = arith.subf %141, %142 : vector<16x128xf32>
    %cst_55 = arith.constant 0.000000e+00 : f32
    %144 = vector.broadcast %cst_55 : f32 to vector<16x128xf32>
    %145 = arith.cmpf olt, %33, %144 : vector<16x128xf32>
    %cst_56 = arith.constant 0.000000e+00 : f32
    %146 = vector.broadcast %cst_56 : f32 to vector<16x128xf32>
    %147 = arith.cmpf oge, %52, %146 : vector<16x128xf32>
    %cst_57 = arith.constant 1.000000e+00 : f32
    %cst_58 = arith.constant -1.000000e+00 : f32
    %148 = vector.broadcast %cst_57 : f32 to vector<16x128xf32>
    %149 = vector.broadcast %cst_58 : f32 to vector<16x128xf32>
    %150 = arith.select %147, %148, %149 : vector<16x128xi1>, vector<16x128xf32>
    %cst_59 = arith.constant 0.000000e+00 : f32
    %151 = vector.broadcast %cst_59 : f32 to vector<16x128xf32>
    %152 = arith.select %145, %150, %151 : vector<16x128xi1>, vector<16x128xf32>
    %cst_60 = arith.constant 9.99999974E-6 : f32
    %153 = vector.broadcast %cst_60 : f32 to vector<16x128xf32>
    %154 = arith.addf %33, %153 : vector<16x128xf32>
    %155 = tpu.reciprocal %154 {approx = true} : vector<16x128xf32> -> vector<16x128xf32>
    %156 = arith.mulf %52, %155 : vector<16x128xf32>
    %cst_61 = arith.constant 0.000000e+00 : f32
    %157 = vector.broadcast %cst_61 : f32 to vector<16x128xf32>
    %158 = arith.cmpf olt, %156, %157 : vector<16x128xf32>
    %cst_62 = arith.constant -1.000000e+00 : f32
    %cst_63 = arith.constant 1.000000e+00 : f32
    %159 = vector.broadcast %cst_62 : f32 to vector<16x128xf32>
    %160 = vector.broadcast %cst_63 : f32 to vector<16x128xf32>
    %161 = arith.select %158, %159, %160 : vector<16x128xi1>, vector<16x128xf32>
    %162 = math.absf %156 : vector<16x128xf32>
    %cst_64 = arith.constant 2.41421366 : f32
    %163 = vector.broadcast %cst_64 : f32 to vector<16x128xf32>
    %164 = arith.cmpf ogt, %162, %163 : vector<16x128xf32>
    %cst_65 = arith.constant 0.414213568 : f32
    %165 = vector.broadcast %cst_65 : f32 to vector<16x128xf32>
    %166 = arith.cmpf ogt, %162, %165 : vector<16x128xf32>
    %cst_66 = arith.constant 1.000000e+00 : f32
    %167 = vector.broadcast %cst_66 : f32 to vector<16x128xf32>
    %168 = arith.subf %162, %167 : vector<16x128xf32>
    %cst_67 = arith.constant -1.000000e+00 : f32
    %169 = vector.broadcast %cst_67 : f32 to vector<16x128xf32>
    %170 = arith.select %164, %169, %168 : vector<16x128xi1>, vector<16x128xf32>
    %cst_68 = arith.constant 1.000000e+00 : f32
    %171 = vector.broadcast %cst_68 : f32 to vector<16x128xf32>
    %172 = arith.addf %162, %171 : vector<16x128xf32>
    %173 = arith.select %164, %162, %172 : vector<16x128xi1>, vector<16x128xf32>
    %174 = tpu.reciprocal %173 {approx = true} : vector<16x128xf32> -> vector<16x128xf32>
    %175 = arith.mulf %170, %174 : vector<16x128xf32>
    %176 = arith.select %166, %175, %162 : vector<16x128xi1>, vector<16x128xf32>
    %cst_69 = arith.constant 0.785398185 : f32
    %cst_70 = arith.constant 0.000000e+00 : f32
    %177 = vector.broadcast %cst_69 : f32 to vector<16x128xf32>
    %178 = vector.broadcast %cst_70 : f32 to vector<16x128xf32>
    %179 = arith.select %166, %177, %178 : vector<16x128xi1>, vector<16x128xf32>
    %cst_71 = arith.constant 1.57079637 : f32
    %180 = vector.broadcast %cst_71 : f32 to vector<16x128xf32>
    %181 = arith.select %164, %180, %179 : vector<16x128xi1>, vector<16x128xf32>
    %182 = arith.mulf %176, %176 : vector<16x128xf32>
    %cst_72 = arith.constant 0.0805374458 : f32
    %183 = vector.broadcast %cst_72 : f32 to vector<16x128xf32>
    %184 = arith.mulf %183, %182 : vector<16x128xf32>
    %cst_73 = arith.constant 0.138776854 : f32
    %185 = vector.broadcast %cst_73 : f32 to vector<16x128xf32>
    %186 = arith.subf %184, %185 : vector<16x128xf32>
    %187 = arith.mulf %186, %182 : vector<16x128xf32>
    %cst_74 = arith.constant 0.199777111 : f32
    %188 = vector.broadcast %cst_74 : f32 to vector<16x128xf32>
    %189 = arith.addf %187, %188 : vector<16x128xf32>
    %190 = arith.mulf %189, %182 : vector<16x128xf32>
    %cst_75 = arith.constant 0.333329499 : f32
    %191 = vector.broadcast %cst_75 : f32 to vector<16x128xf32>
    %192 = arith.subf %190, %191 : vector<16x128xf32>
    %193 = arith.mulf %192, %182 : vector<16x128xf32>
    %194 = arith.mulf %193, %176 : vector<16x128xf32>
    %195 = arith.addf %194, %176 : vector<16x128xf32>
    %196 = arith.addf %181, %195 : vector<16x128xf32>
    %197 = arith.mulf %161, %196 : vector<16x128xf32>
    %cst_76 = arith.constant 3.14159274 : f32
    %198 = vector.broadcast %cst_76 : f32 to vector<16x128xf32>
    %199 = arith.mulf %198, %152 : vector<16x128xf32>
    %200 = arith.addf %197, %199 : vector<16x128xf32>
    %cst_77 = arith.constant 0.318309873 : f32
    %201 = vector.broadcast %cst_77 : f32 to vector<16x128xf32>
    %202 = arith.mulf %200, %201 : vector<16x128xf32>
    %203 = vector.broadcast %1 : f32 to vector<16x128xf32>
    %204 = arith.addf %202, %203 : vector<16x128xf32>
    %cst_78 = arith.constant 1.57079637 : f32
    %205 = vector.broadcast %cst_78 : f32 to vector<16x128xf32>
    %206 = arith.mulf %205, %204 : vector<16x128xf32>
    %cst_79 = arith.constant 0.318309873 : f32
    %207 = vector.broadcast %cst_79 : f32 to vector<16x128xf32>
    %208 = arith.mulf %206, %207 : vector<16x128xf32>
    %cst_80 = arith.constant 5.000000e-01 : f32
    %209 = vector.broadcast %cst_80 : f32 to vector<16x128xf32>
    %210 = arith.addf %208, %209 : vector<16x128xf32>
    %211 = math.floor %210 : vector<16x128xf32>
    %cst_81 = arith.constant 3.14159274 : f32
    %212 = vector.broadcast %cst_81 : f32 to vector<16x128xf32>
    %213 = arith.mulf %212, %211 : vector<16x128xf32>
    %214 = arith.subf %206, %213 : vector<16x128xf32>
    %c0_82 = arith.constant 0 : index
    %c0_83 = arith.constant 0 : index
    %215 = arith.index_cast %2 : i32 to index
    %c0_84 = arith.constant 0 : index
    %216 = vector.load %arg5[%c0_82, %c0_83, %215, %c0_84] : memref<1x2x16x128xf32, #tpu.memory_space<vmem>>, vector<1x1x16x128xf32>
    %217 = vector.shape_cast %216 : vector<1x1x16x128xf32> to vector<16x128xf32>
    %218 = vector.shape_cast %143 : vector<16x128xf32> to vector<1x1x16x128xf32>
    tpu.vector_store %arg5[%c0_82, %c0_83, %215, %c0_84], %218 {strides = array<i32>} : memref<1x2x16x128xf32, #tpu.memory_space<vmem>>, vector<1x1x16x128xf32>,
    %cst_85 = arith.constant 0.636619746 : f32
    %219 = vector.broadcast %cst_85 : f32 to vector<16x128xf32>
    %220 = arith.mulf %214, %219 : vector<16x128xf32>
    %c0_86 = arith.constant 0 : index
    %c1_87 = arith.constant 1 : index
    %221 = arith.index_cast %2 : i32 to index
    %c0_88 = arith.constant 0 : index
    %222 = vector.load %arg5[%c0_86, %c1_87, %221, %c0_88] : memref<1x2x16x128xf32, #tpu.memory_space<vmem>>, vector<1x1x16x128xf32>
    %223 = vector.shape_cast %222 : vector<1x1x16x128xf32> to vector<16x128xf32>
    %224 = vector.shape_cast %220 : vector<16x128xf32> to vector<1x1x16x128xf32>
    tpu.vector_store %arg5[%c0_86, %c1_87, %221, %c0_88], %224 {strides = array<i32>} : memref<1x2x16x128xf32, #tpu.memory_space<vmem>>, vector<1x1x16x128xf32>,
    return
  }
  func.func @transform_0(%arg0: i32, %arg1: i32) -> i32 {
    %c0_i32 = arith.constant 0 : i32
    %c0_i32_0 = arith.constant 0 : i32
    return %c0_i32 : i32
  }
  func.func @transform_1(%arg0: i32, %arg1: i32) -> (i32, i32, i32, i32) {
    %c0_i32 = arith.constant 0 : i32
    %c0_i32_0 = arith.constant 0 : i32
    %c0_i32_1 = arith.constant 0 : i32
    return %arg1, %c0_i32, %arg0, %c0_i32_0 : i32, i32, i32, i32
  }
  func.func @transform_2(%arg0: i32, %arg1: i32) -> (i32, i32, i32) {
    %c0_i32 = arith.constant 0 : i32
    %c0_i32_0 = arith.constant 0 : i32
    %c0_i32_1 = arith.constant 0 : i32
    return %c0_i32, %arg0, %c0_i32_0 : i32, i32, i32
  }
  func.func @transform_3(%arg0: i32, %arg1: i32) -> (i32, i32, i32, i32) {
    %c0_i32 = arith.constant 0 : i32
    %c0_i32_0 = arith.constant 0 : i32
    %c0_i32_1 = arith.constant 0 : i32
    return %arg1, %c0_i32, %arg0, %c0_i32_0 : i32, i32, i32, i32
  }
}

</mosaic_0001>

<llo_original>
// kernel: dense_affine_3d_grid_gen_rotate.1
$region0: #{dense_affine_3d_grid_gen_rotate.1}
  #allocation0 [shape = 'u32[]', space=smem, size = 0x4, offset = 0x4, fixed_abs, tag = 'smem constant byte address 0x4 - core index']
  #allocation1 [shape = 'u32[144,128]{1,0:T(1,128)}', space=vmem, size = 0x12000, scoped, tag = 'internal scratch']
  %s0 = inlined_call_operand.vmem [shape: f32[2], index: 0, kind: input, shape index: {}]
  %s1 = inlined_call_operand.vmem [shape: f32[2,12,16,128], index: 1, kind: input, shape index: {}]
  %s2 = inlined_call_operand.vmem [shape: f32[4,16,128], index: 2, kind: input, shape index: {}]
  %s3 = inlined_call_operand.vmem [shape: f32[2,2,16,128], index: 3, kind: output, shape index: {}]
  %s4 = sld [smem:[#allocation0]]
  $region49: #{dense_affine_3d_grid_gen_rotate.1} parent=0
    _
  %s6 = ssub.s32 1, %s4
  %s7 = scalar_select 0, %s6, %s4
  $region1: #{dense_affine_3d_grid_gen_rotate.1} parent=0
    #allocation2 [shape = 'u8[512]{0}', space=smem, size = 0x200, scoped, tag = 'input window, operand 0, single buffered']
    #allocation3 [shape = 's32[2]{0}', space=sflag, size = 0x8, scoped, tag = 'scoped memory for dense_affine_3d_grid_gen_rotate.1']
    %8 = vsyncpa [#allocation3], 0
    loop: start=0, step=1, limit=4
    $region2: #{dense_affine_3d_grid_gen_rotate.1} parent=1 // loop_pre_header
      _
    $region3: #{dense_affine_3d_grid_gen_rotate.1} parent=1 // loop_header
      %s10 = sphi 0, %s14
      %p11 = scmp.ge.s32.totalorder %s10, 4
      %s17 = sphi 0, %s29
      %s18 = sphi 0, %s25
      %s19 = sphi 0, %s17
      %s20 = sphi 0, %s18
      %s21 = sphi 0, %s19
      %s22 = sphi 0, %s20
      %s30 = sphi 0, %s30
      %s32 = sphi 0, %s30
      %s33 = sphi 0, %s32
      %s47 = sphi 0, %s33
      %s55 = sphi 0, %s57
      %s58 = sphi 0, %s55
      %s59 = sphi 0, %s58
      %s75 = sphi 0, %s59
      %s81 = sphi 0, %s83
      %s84 = sphi 0, %s81
      %s85 = sphi 0, %s84
      %s101 = sphi 0, %s85
      %s109 = sphi 0, %s111
      %s112 = sphi 0, %s109
      %s113 = sphi 0, %s112
      %s129 = sphi 0, %s113
    $region4: #{dense_affine_3d_grid_gen_rotate.1} parent=1 // loop_header_branch
      %13 = sbr.rel (%p11) target = $region8
    $region5: #{dense_affine_3d_grid_gen_rotate.1} parent=1 // loop_body
      %s15 = ssub.s32 %s10, 1
      %s16 = ssub.s32 %s10, 2
      %s23 = sadd.s32 1, %s18
      %p24 = scmp.ge.s32.totalorder %s23, 2
      %s25 = scalar_select %p24, 0, %s23
      %s26 = sadd.s32 1, %s17
      %s27 = scalar_select %p24, %s26, %s17
      %p28 = scmp.ge.s32.totalorder %s27, 1
      %s29 = scalar_select %p28, 0, %s27
      %s31 = sadd.s32 %s30, 1
      %p34 = scmp.eq.s32.totalorder %s10, 1
      %p35 = scmp.ne.s32.totalorder %s30, %s32
      %p36 = scmp.eq.s32.totalorder %s10, 0
      %p37 = por %p35, %p36
      %p38 = scmp.ne.s32.totalorder %s30, %s32
      %p39 = scmp.eq.s32.totalorder %s15, 1
      %p40 = por %p38, %p39
      %p41 = scmp.ne.s32.totalorder %s32, %s33
      %p42 = scmp.eq.s32.totalorder %s15, 0
      %p43 = por %p41, %p42
      %p44 = scmp.ne.s32.totalorder %s32, %s33
      %p45 = scmp.eq.s32.totalorder %s16, 1
      %p46 = por %p44, %p45
      %p48 = scmp.ne.s32.totalorder %s33, %s47
      %p49 = scmp.eq.s32.totalorder %s16, 0
      %p50 = por %p48, %p49
      %s51 = ssub.s32 %s18, %s25
      %s52 = ssub.s32 %s17, %s29
      %s53 = sor.u32 %s51, %s52
      %p54 = scmp.eq.s32.totalorder %s53, 0
      %s56 = sadd.s32 %s55, 1
      %s57 = scalar_select %p54, %s55, %s56
      %p60 = pneg %p54
      %p61 = scmp.eq.s32.totalorder %s10, 1
      %p62 = por %p60, %p61
      %p63 = scmp.ne.s32.totalorder %s55, %s58
      %p64 = scmp.eq.s32.totalorder %s10, 0
      %p65 = por %p63, %p64
      %p66 = scmp.ne.s32.totalorder %s55, %s58
      %p67 = scmp.eq.s32.totalorder %s15, 1
      %p68 = por %p66, %p67
      %p69 = scmp.ne.s32.totalorder %s58, %s59
      %p70 = scmp.eq.s32.totalorder %s15, 0
      %p71 = por %p69, %p70
      %p72 = scmp.ne.s32.totalorder %s58, %s59
      %p73 = scmp.eq.s32.totalorder %s16, 1
      %p74 = por %p72, %p73
      %p76 = scmp.ne.s32.totalorder %s59, %s75
      %p77 = scmp.eq.s32.totalorder %s16, 0
      %p78 = por %p76, %p77
      %s79 = ssub.s32 %s17, %s29
      %p80 = scmp.eq.s32.totalorder %s79, 0
      %s82 = sadd.s32 %s81, 1
      %s83 = scalar_select %p80, %s81, %s82
      %p86 = pneg %p80
      %p87 = scmp.eq.s32.totalorder %s10, 1
      %p88 = por %p86, %p87
      %p89 = scmp.ne.s32.totalorder %s81, %s84
      %p90 = scmp.eq.s32.totalorder %s10, 0
      %p91 = por %p89, %p90
      %p92 = scmp.ne.s32.totalorder %s81, %s84
      %p93 = scmp.eq.s32.totalorder %s15, 1
      %p94 = por %p92, %p93
      %p95 = scmp.ne.s32.totalorder %s84, %s85
      %p96 = scmp.eq.s32.totalorder %s15, 0
      %p97 = por %p95, %p96
      %p98 = scmp.ne.s32.totalorder %s84, %s85
      %p99 = scmp.eq.s32.totalorder %s16, 1
      %p100 = por %p98, %p99
      %p102 = scmp.ne.s32.totalorder %s85, %s101
      %p103 = scmp.eq.s32.totalorder %s16, 0
      %p104 = por %p102, %p103
      %s105 = ssub.s32 %s18, %s25
      %s106 = ssub.s32 %s17, %s29
      %s107 = sor.u32 %s105, %s106
      %p108 = scmp.eq.s32.totalorder %s107, 0
      %s110 = sadd.s32 %s109, 1
      %s111 = scalar_select %p108, %s109, %s110
      %p114 = pneg %p108
      %p115 = scmp.eq.s32.totalorder %s10, 1
      %p116 = por %p114, %p115
      %p117 = scmp.ne.s32.totalorder %s109, %s112
      %p118 = scmp.eq.s32.totalorder %s10, 0
      %p119 = por %p117, %p118
      %p120 = scmp.ne.s32.totalorder %s109, %s112
      %p121 = scmp.eq.s32.totalorder %s15, 1
      %p122 = por %p120, %p121
      %p123 = scmp.ne.s32.totalorder %s112, %s113
      %p124 = scmp.eq.s32.totalorder %s15, 0
      %p125 = por %p123, %p124
      %p126 = scmp.ne.s32.totalorder %s112, %s113
      %p127 = scmp.eq.s32.totalorder %s16, 1
      %p128 = por %p126, %p127
      %p130 = scmp.ne.s32.totalorder %s113, %s129
      %p131 = scmp.eq.s32.totalorder %s16, 0
      %p132 = por %p130, %p131
      %p133 = scmp.le.s32.totalorder 1, %s10
      %p134 = scmp.lt.s32.totalorder %s10, 3
      %p135 = pnand %p133, %p134
      %p136 = pneg %p135
      // Predicated region
      $region9: #{dense_affine_3d_grid_gen_rotate.1} parent=5 // pred_check
        _
      $region10: #{dense_affine_3d_grid_gen_rotate.1} parent=5 // pred_check_branch
        %138 = sbr.rel (%p135) target = $region12
      $region11: #{dense_affine_3d_grid_gen_rotate.1} parent=5 // pred_region
        %s139 = ssub.s32 %s10, 1
        // Predicated region
        $region13: #{dense_affine_3d_grid_gen_rotate.1} parent=11 // pred_check
          %p140 = pneg %p43
        $region14: #{dense_affine_3d_grid_gen_rotate.1} parent=11 // pred_check_branch
          %142 = sbr.rel (%p140) target = $region16
        $region15: #{dense_affine_3d_grid_gen_rotate.1} parent=11 // pred_region
          %s144 = ssub.s32 16, 16
          %145 = vsyncadd [#allocation3], %s144
          %s147 = sshll.u32 %s0, 4
          %s148 = int_to_ptr.vmem [resolvable:$true] %s147
          %150 = dma.vmem_to_smem %s148, 16, [#allocation2], [#allocation3]
        $region16: #{dense_affine_3d_grid_gen_rotate.1} parent=11 // pred_fallthru
          _
        // Predicated region
        $region17: #{dense_affine_3d_grid_gen_rotate.1} parent=11 // pred_check
          %p151 = pneg %p97
        $region18: #{dense_affine_3d_grid_gen_rotate.1} parent=11 // pred_check_branch
          %153 = sbr.rel (%p151) target = $region20
        $region19: #{dense_affine_3d_grid_gen_rotate.1} parent=11 // pred_region
          %s154 = smul.u32 2, %s19
          %p155 = scmp.lt.s32.totalorder %s154, 1
          %s156 = scalar_select %p155, %s154, 1
          %s157 = smul.addr %s156, 8
          %s158 = scalar_lea.vmem %s2, %s157
          %s159 = smul.u32 2, %s19
        $region20: #{dense_affine_3d_grid_gen_rotate.1} parent=11 // pred_fallthru
          _
      $region12: #{dense_affine_3d_grid_gen_rotate.1} parent=5 // pred_fallthru
        _
      %p160 = scmp.lt.s32.totalorder %s10, 2
      // Predicated region
      $region21: #{dense_affine_3d_grid_gen_rotate.1} parent=5 // pred_check
        %p161 = pneg %p160
      $region22: #{dense_affine_3d_grid_gen_rotate.1} parent=5 // pred_check_branch
        %163 = sbr.rel (%p161) target = $region24
      $region23: #{dense_affine_3d_grid_gen_rotate.1} parent=5 // pred_region
        // Predicated region
        $region25: #{dense_affine_3d_grid_gen_rotate.1} parent=23 // pred_check
          %p164 = pneg %p65
        $region26: #{dense_affine_3d_grid_gen_rotate.1} parent=23 // pred_check_branch
          %166 = sbr.rel (%p164) target = $region28
        $region27: #{dense_affine_3d_grid_gen_rotate.1} parent=23 // pred_region
          %s167 = smul.u32 2, %s17
          %p168 = scmp.lt.s32.totalorder %s18, 1
          %s169 = scalar_select %p168, %s18, 1
          %p170 = scmp.lt.s32.totalorder %s167, 1
          %s171 = scalar_select %p170, %s167, 1
          %s172 = smul.addr %s169, 24
          %s173 = sadd.s32 %s171, %s172
          %s174 = smul.addr %s173, 8
          %s175 = scalar_lea.vmem %s1, %s174
          %s176 = smul.u32 2, %s17
        $region28: #{dense_affine_3d_grid_gen_rotate.1} parent=23 // pred_fallthru
          _
      $region24: #{dense_affine_3d_grid_gen_rotate.1} parent=5 // pred_fallthru
        _
      %p177 = scmp.le.s32.totalorder 1, %s10
      %p178 = scmp.lt.s32.totalorder %s10, 3
      %p179 = pnand %p177, %p178
      %p180 = pneg %p179
      // Predicated region
      $region29: #{dense_affine_3d_grid_gen_rotate.1} parent=5 // pred_check
        _
      $region30: #{dense_affine_3d_grid_gen_rotate.1} parent=5 // pred_check_branch
        %182 = sbr.rel (%p179) target = $region32
      $region31: #{dense_affine_3d_grid_gen_rotate.1} parent=5 // pred_region
        %s183 = ssub.s32 %s10, 1
        // Predicated region
        $region33: #{dense_affine_3d_grid_gen_rotate.1} parent=31 // pred_check
          %p184 = pneg %p43
        $region34: #{dense_affine_3d_grid_gen_rotate.1} parent=31 // pred_check_branch
          %186 = sbr.rel (%p184) target = $region36
        $region35: #{dense_affine_3d_grid_gen_rotate.1} parent=31 // pred_region
          %187 = dma.done [#allocation3], 16
        $region36: #{dense_affine_3d_grid_gen_rotate.1} parent=31 // pred_fallthru
          _
        %188 = sfence
        %p189 = pneg %p43
        %p190 = pneg %p40
        %s191 = smul.u32 2, %s19
        %p192 = scmp.lt.s32.totalorder %s20, 1
        %s193 = scalar_select %p192, %s20, 1
        %p194 = scmp.lt.s32.totalorder %s191, 1
        %s195 = scalar_select %p194, %s191, 1
        %s196 = smul.addr %s193, 24
        %s197 = sadd.s32 %s195, %s196
        %s198 = smul.addr %s197, 8
        %s199 = scalar_lea.vmem %s1, %s198
        %p200 = pneg %p71
        %p201 = pneg %p68
        %s202 = smul.u32 2, %s19
        %p203 = scmp.lt.s32.totalorder %s202, 1
        %s204 = scalar_select %p203, %s202, 1
        %s205 = smul.addr %s204, 8
        %s206 = scalar_lea.vmem %s2, %s205
        %p207 = pneg %p97
        %p208 = pneg %p94
        %p209 = pneg %p125
        %p210 = pneg %p122
        %s211 = smul.u32 2, %s19
        %p212 = scmp.lt.s32.totalorder %s20, 1
        %s213 = scalar_select %p212, %s20, 1
        %p214 = scmp.lt.s32.totalorder %s211, 1
        %s215 = scalar_select %p214, %s211, 1
        %s216 = smul.addr %s213, 4
        %s217 = sadd.s32 %s215, %s216
        %s218 = smul.addr %s217, 8
        %s219 = scalar_lea.vmem %s3, %s218
        %s220 = smul.u32 2, %s19
        %p221 = scmp.lt.s32.totalorder %s20, 1
        %s222 = scalar_select %p221, %s20, 1
        %p223 = scmp.lt.s32.totalorder %s220, 1
        %s224 = scalar_select %p223, %s220, 1
        %s225 = smul.addr %s222, 24
        %s226 = sadd.s32 %s224, %s225
        %s227 = smul.addr %s226, 8
        %s228 = scalar_lea.vmem %s1, %s227
        %s229 = smul.u32 2, %s19
        %s230 = smul.u32 2, %s19
        %p231 = scmp.lt.s32.totalorder %s230, 1
        %s232 = scalar_select %p231, %s230, 1
        %s233 = smul.addr %s232, 8
        %s234 = scalar_lea.vmem %s2, %s233
        %s235 = smul.u32 2, %s19
        %s236 = smul.u32 2, %s19
        %p237 = scmp.lt.s32.totalorder %s20, 1
        %s238 = scalar_select %p237, %s20, 1
        %p239 = scmp.lt.s32.totalorder %s236, 1
        %s240 = scalar_select %p239, %s236, 1
        %s241 = smul.addr %s238, 4
        %s242 = sadd.s32 %s240, %s241
        %s243 = smul.addr %s242, 8
        %s244 = scalar_lea.vmem %s3, %s243
        %s245 = smul.u32 2, %s19
        %s246 = sld [smem:[#allocation2 + %s20]]
        %v247 = vld [vmem:[%s234] sm:$0xff]
        %v248 = vld [vmem:[%s234 + $0x8] sm:$0xff]
        %s249 = sadd.s32 0, 16
        %s250 = scalar_lea.vmem %s234, %s249
        %v251 = vld [vmem:[%s250] sm:$0xff]
        %v252 = vld [vmem:[%s250 + $0x8] sm:$0xff]
        %s253 = sadd.s32 0, 32
        %s254 = scalar_lea.vmem %s234, %s253
        %v255 = vld [vmem:[%s254] sm:$0xff]
        %v256 = vld [vmem:[%s254 + $0x8] sm:$0xff]
        %s257 = sadd.s32 0, 48
        %s258 = scalar_lea.vmem %s234, %s257
        %v259 = vld [vmem:[%s258] sm:$0xff]
        %v260 = vld [vmem:[%s258 + $0x8] sm:$0xff]
        %v261 = vld [vmem:[%s228] sm:$0xff]
        %v262 = vld [vmem:[%s228 + $0x8] sm:$0xff]
        %v263 = vmul.f32 %v247, %v261
        %v264 = vmul.f32 %v248, %v262
        %s265 = scalar_lea.vmem %s228, %s249
        %v266 = vld [vmem:[%s265] sm:$0xff]
        %v267 = vld [vmem:[%s265 + $0x8] sm:$0xff]
        %v268 = vmul.f32 %v251, %v266
        %v269 = vmul.f32 %v252, %v267
        %v270 = vadd.f32 %v263, %v268
        %v271 = vadd.f32 %v264, %v269
        %s272 = scalar_lea.vmem %s228, %s253
        %v273 = vld [vmem:[%s272] sm:$0xff]
        %v274 = vld [vmem:[%s272 + $0x8] sm:$0xff]
        %v275 = vmul.f32 %v255, %v273
        %v276 = vmul.f32 %v256, %v274
        %v277 = vadd.f32 %v270, %v275
        %v278 = vadd.f32 %v271, %v276
        %s279 = scalar_lea.vmem %s228, %s257
        %v280 = vld [vmem:[%s279] sm:$0xff]
        %v281 = vld [vmem:[%s279 + $0x8] sm:$0xff]
        %v282 = vmul.f32 %v259, %v280
        %v283 = vmul.f32 %v260, %v281
        %v284 = vadd.f32 %v277, %v282
        %v285 = vadd.f32 %v278, %v283
        %s286 = sadd.s32 0, 64
        %s287 = scalar_lea.vmem %s228, %s286
        %v288 = vld [vmem:[%s287] sm:$0xff]
        %v289 = vld [vmem:[%s287 + $0x8] sm:$0xff]
        %v290 = vmul.f32 %v247, %v288
        %v291 = vmul.f32 %v248, %v289
        %s292 = sadd.s32 0, 80
        %s293 = scalar_lea.vmem %s228, %s292
        %v294 = vld [vmem:[%s293] sm:$0xff]
        %v295 = vld [vmem:[%s293 + $0x8] sm:$0xff]
        %v296 = vmul.f32 %v251, %v294
        %v297 = vmul.f32 %v252, %v295
        %v298 = vadd.f32 %v290, %v296
        %v299 = vadd.f32 %v291, %v297
        %s300 = sadd.s32 0, 96
        %s301 = scalar_lea.vmem %s228, %s300
        %v302 = vld [vmem:[%s301] sm:$0xff]
        %v303 = vld [vmem:[%s301 + $0x8] sm:$0xff]
        %v304 = vmul.f32 %v255, %v302
        %v305 = vmul.f32 %v256, %v303
        %v306 = vadd.f32 %v298, %v304
        %v307 = vadd.f32 %v299, %v305
        %s308 = sadd.s32 0, 112
        %s309 = scalar_lea.vmem %s228, %s308
        %v310 = vld [vmem:[%s309] sm:$0xff]
        %v311 = vld [vmem:[%s309 + $0x8] sm:$0xff]
        %v312 = vmul.f32 %v259, %v310
        %v313 = vmul.f32 %v260, %v311
        %v314 = vadd.f32 %v306, %v312
        %v315 = vadd.f32 %v307, %v313
        %s316 = sadd.s32 0, 128
        %s317 = scalar_lea.vmem %s228, %s316
        %v318 = vld [vmem:[%s317] sm:$0xff]
        %v319 = vld [vmem:[%s317 + $0x8] sm:$0xff]
        %v320 = vmul.f32 %v247, %v318
        %v321 = vmul.f32 %v248, %v319
        %s322 = sadd.s32 0, 144
        %s323 = scalar_lea.vmem %s228, %s322
        %v324 = vld [vmem:[%s323] sm:$0xff]
        %v325 = vld [vmem:[%s323 + $0x8] sm:$0xff]
        %v326 = vmul.f32 %v251, %v324
        %v327 = vmul.f32 %v252, %v325
        %v328 = vadd.f32 %v320, %v326
        %v329 = vadd.f32 %v321, %v327
        %s330 = sadd.s32 0, 160
        %s331 = scalar_lea.vmem %s228, %s330
        %v332 = vld [vmem:[%s331] sm:$0xff]
        %v333 = vld [vmem:[%s331 + $0x8] sm:$0xff]
        %v334 = vmul.f32 %v255, %v332
        %v335 = vmul.f32 %v256, %v333
        %v336 = vadd.f32 %v328, %v334
        %v337 = vadd.f32 %v329, %v335
        %s338 = sadd.s32 0, 176
        %s339 = scalar_lea.vmem %s228, %s338
        %v340 = vld [vmem:[%s339] sm:$0xff]
        %v341 = vld [vmem:[%s339 + $0x8] sm:$0xff]
        %v342 = vmul.f32 %v259, %v340
        %v343 = vmul.f32 %v260, %v341
        %v344 = vadd.f32 %v336, %v342
        %v345 = vadd.f32 %v337, %v343
        %v346 = vmul.f32 %v284, %v284
        %v347 = vmul.f32 %v285, %v285
        %v348 = vmul.f32 %v314, %v314
        %v349 = vmul.f32 %v315, %v315
        %v350 = vadd.f32 %v346, %v348
        %v351 = vadd.f32 %v347, %v349
        %v352 = vmul.f32 %v344, %v344
        %v353 = vmul.f32 %v345, %v345
        %v354 = vadd.f32 %v350, %v352
        %v355 = vadd.f32 %v351, %v353
        %v356 = vrsqrt.pop %v354
        %v357 = vmul.f32 %v354, %v356
        %vm358 = vcmp.eq.f32.partialorder %v354, inf
        %v359 = vsel %vm358, %v354, %v357
        %vm360 = vcmp.eq.f32.partialorder %v354, 0.0
        %v361 = vand.u32 %v354, 2147483648
        %v362 = vsel %vm360, %v361, %v359
        %v363 = vrsqrt.pop %v355
        %v364 = vmul.f32 %v355, %v363
        %vm365 = vcmp.eq.f32.partialorder %v355, inf
        %v366 = vsel %vm365, %v355, %v364
        %vm367 = vcmp.eq.f32.partialorder %v355, 0.0
        %v368 = vand.u32 %v355, 2147483648
        %v369 = vsel %vm367, %v368, %v366
        %v370 = vadd.f32 %v362, 1e-05
        %v371 = vadd.f32 %v369, 1e-05
        %v372 = vrcp.pop %v370
        %v373 = vrcp.pop %v371
        %v374 = vmul.f32 %v370, %v372
        %v375 = vmul.f32 %v371, %v373
        %v376 = vsub.f32 2.0, %v374
        %v377 = vsub.f32 2.0, %v375
        %v378 = vmul.f32 %v372, %v376
        %v379 = vmul.f32 %v373, %v377
        %v380 = vmul.f32 %v344, %v378
        %v381 = vmul.f32 %v345, %v379
        %v382 = vmax.f32 %v380, -1.0
        %v383 = vmax.f32 %v381, -1.0
        %v384 = vmin.f32 %v382, 1.0
        %v385 = vmin.f32 %v383, 1.0
        %v386 = vmul.f32 %v384, %v384
        %v387 = vmul.f32 %v385, %v385
        %v388 = vsub.f32 1.0, %v386
        %v389 = vsub.f32 1.0, %v387
        %v390 = vmax.f32 %v388, 1e-30
        %v391 = vmax.f32 %v389, 1e-30
        %v392 = vrsqrt.pop %v390
        %v393 = vrsqrt.pop %v391
        %v394 = vmul.f32 %v384, %v392
        %v395 = vmul.f32 %v385, %v393
        %vm396 = vcmp.lt.f32.partialorder %v394, 0.0
        %vm397 = vcmp.lt.f32.partialorder %v395, 0.0
        %v398 = vsel %vm396, -1.0, 1.0
        %v399 = vsel %vm397, -1.0, 1.0
        %v400 = vand.u32 2147483647, %v394
        %v401 = vand.u32 2147483647, %v395
        %vm402 = vcmp.gt.f32.partialorder %v400, 2.4142137
        %vm403 = vcmp.gt.f32.partialorder %v401, 2.4142137
        %vm404 = vcmp.gt.f32.partialorder %v400, 0.41421357
        %vm405 = vcmp.gt.f32.partialorder %v401, 0.41421357
        %v406 = vsub.f32 %v400, 1.0
        %v407 = vsub.f32 %v401, 1.0
        %v408 = vsel %vm402, -1.0, %v406
        %v409 = vsel %vm403, -1.0, %v407
        %v410 = vadd.f32 %v400, 1.0
        %v411 = vadd.f32 %v401, 1.0
        %v412 = vsel %vm402, %v400, %v410
        %v413 = vsel %vm403, %v401, %v411
        %v414 = vrcp.pop %v412
        %v415 = vrcp.pop %v413
        %v416 = vmul.f32 %v408, %v414
        %v417 = vmul.f32 %v409, %v415
        %v418 = vsel %vm404, %v416, %v400
        %v419 = vsel %vm405, %v417, %v401
        %v420 = vsel %vm404, 0.7853982, 0.0
        %v421 = vsel %vm405, 0.7853982, 0.0
        %v422 = vsel %vm402, 1.5707964, %v420
        %v423 = vsel %vm403, 1.5707964, %v421
        %v424 = vmul.f32 %v418, %v418
        %v425 = vmul.f32 %v419, %v419
        %v426 = vmul.f32 %v424, 0.080537446
        %v427 = vmul.f32 %v425, 0.080537446
        %v428 = vsub.f32 %v426, 0.13877685
        %v429 = vsub.f32 %v427, 0.13877685
        %v430 = vmul.f32 %v428, %v424
        %v431 = vmul.f32 %v429, %v425
        %v432 = vadd.f32 %v430, 0.19977711
        %v433 = vadd.f32 %v431, 0.19977711
        %v434 = vmul.f32 %v432, %v424
        %v435 = vmul.f32 %v433, %v425
        %v436 = vsub.f32 %v434, 0.3333295
        %v437 = vsub.f32 %v435, 0.3333295
        %v438 = vmul.f32 %v436, %v424
        %v439 = vmul.f32 %v437, %v425
        %v440 = vmul.f32 %v438, %v418
        %v441 = vmul.f32 %v439, %v419
        %v442 = vadd.f32 %v440, %v418
        %v443 = vadd.f32 %v441, %v419
        %v444 = vadd.f32 %v422, %v442
        %v445 = vadd.f32 %v423, %v443
        %v446 = vmul.f32 %v398, %v444
        %v447 = vmul.f32 %v399, %v445
        %v448 = vsub.f32 1.5707964, %v446
        %v449 = vsub.f32 1.5707964, %v447
        %v450 = vmul.f32 %v448, 0.63661975
        %v451 = vmul.f32 %v449, 0.63661975
        %v452 = vsub.f32 %v450, 1.0
        %v453 = vsub.f32 %v451, 1.0
        %vm454 = vcmp.lt.f32.partialorder %v284, 0.0
        %vm455 = vcmp.lt.f32.partialorder %v285, 0.0
        %vm456 = vcmp.ge.f32.partialorder %v314, 0.0
        %vm457 = vcmp.ge.f32.partialorder %v315, 0.0
        %v458 = vsel %vm456, 1.0, -1.0
        %v459 = vsel %vm457, 1.0, -1.0
        %v460 = vsel %vm454, %v458, 0.0
        %v461 = vsel %vm455, %v459, 0.0
        %v462 = vadd.f32 %v284, 1e-05
        %v463 = vadd.f32 %v285, 1e-05
        %v464 = vrcp.pop %v462
        %v465 = vrcp.pop %v463
        %v466 = vmul.f32 %v314, %v464
        %v467 = vmul.f32 %v315, %v465
        %vm468 = vcmp.lt.f32.partialorder %v466, 0.0
        %vm469 = vcmp.lt.f32.partialorder %v467, 0.0
        %v470 = vsel %vm468, -1.0, 1.0
        %v471 = vsel %vm469, -1.0, 1.0
        %v472 = vand.u32 2147483647, %v466
        %v473 = vand.u32 2147483647, %v467
        %vm474 = vcmp.gt.f32.partialorder %v472, 2.4142137
        %vm475 = vcmp.gt.f32.partialorder %v473, 2.4142137
        %vm476 = vcmp.gt.f32.partialorder %v472, 0.41421357
        %vm477 = vcmp.gt.f32.partialorder %v473, 0.41421357
        %v478 = vsub.f32 %v472, 1.0
        %v479 = vsub.f32 %v473, 1.0
        %v480 = vsel %vm474, -1.0, %v478
        %v481 = vsel %vm475, -1.0, %v479
        %v482 = vadd.f32 %v472, 1.0
        %v483 = vadd.f32 %v473, 1.0
        %v484 = vsel %vm474, %v472, %v482
        %v485 = vsel %vm475, %v473, %v483
        %v486 = vrcp.pop %v484
        %v487 = vrcp.pop %v485
        %v488 = vmul.f32 %v480, %v486
        %v489 = vmul.f32 %v481, %v487
        %v490 = vsel %vm476, %v488, %v472
        %v491 = vsel %vm477, %v489, %v473
        %v492 = vsel %vm476, 0.7853982, 0.0
        %v493 = vsel %vm477, 0.7853982, 0.0
        %v494 = vsel %vm474, 1.5707964, %v492
        %v495 = vsel %vm475, 1.5707964, %v493
        %v496 = vmul.f32 %v490, %v490
        %v497 = vmul.f32 %v491, %v491
        %v498 = vmul.f32 %v496, 0.080537446
        %v499 = vmul.f32 %v497, 0.080537446
        %v500 = vsub.f32 %v498, 0.13877685
        %v501 = vsub.f32 %v499, 0.13877685
        %v502 = vmul.f32 %v500, %v496
        %v503 = vmul.f32 %v501, %v497
        %v504 = vadd.f32 %v502, 0.19977711
        %v505 = vadd.f32 %v503, 0.19977711
        %v506 = vmul.f32 %v504, %v496
        %v507 = vmul.f32 %v505, %v497
        %v508 = vsub.f32 %v506, 0.3333295
        %v509 = vsub.f32 %v507, 0.3333295
        %v510 = vmul.f32 %v508, %v496
        %v511 = vmul.f32 %v509, %v497
        %v512 = vmul.f32 %v510, %v490
        %v513 = vmul.f32 %v511, %v491
        %v514 = vadd.f32 %v512, %v490
        %v515 = vadd.f32 %v513, %v491
        %v516 = vadd.f32 %v494, %v514
        %v517 = vadd.f32 %v495, %v515
        %v518 = vmul.f32 %v470, %v516
        %v519 = vmul.f32 %v471, %v517
        %v520 = vmul.f32 %v460, 3.1415927
        %v521 = vmul.f32 %v461, 3.1415927
        %v522 = vadd.f32 %v518, %v520
        %v523 = vadd.f32 %v519, %v521
        %v524 = vmul.f32 %v522, 0.31830987
        %v525 = vmul.f32 %v523, 0.31830987
        %v526 = vstv %s246
        %v527 = vadd.f32 %v524, %v526
        %v528 = vadd.f32 %v525, %v526
        %v529 = vmul.f32 %v527, 1.5707964
        %v530 = vmul.f32 %v528, 1.5707964
        %v531 = vmul.f32 %v529, 0.31830987
        %v532 = vmul.f32 %v530, 0.31830987
        %v533 = vadd.f32 %v531, 0.5
        %v534 = vadd.f32 %v532, 0.5
        %v535 = vfloor.f32 %v533
        %v536 = vfloor.f32 %v534
        %v537 = vmul.f32 %v535, 3.1415927
        %v538 = vmul.f32 %v536, 3.1415927
        %v539 = vsub.f32 %v529, %v537
        %v540 = vsub.f32 %v530, %v538
        %541 = vst [vmem:[%s244] sm:$0xff] %v452
        %542 = vst [vmem:[%s244 + $0x8] sm:$0xff] %v453
        %v543 = vmul.f32 %v539, 0.63661975
        %v544 = vmul.f32 %v540, 0.63661975
        %s545 = scalar_lea.vmem %s244, %s249
        %546 = vst [vmem:[%s545] sm:$0xff] %v543
        %547 = vst [vmem:[%s545 + $0x8] sm:$0xff] %v544
        %s548 = smul.u32 2, %s19
        %p549 = scmp.lt.s32.totalorder %s20, 1
        %s550 = scalar_select %p549, %s20, 1
        %p551 = scmp.lt.s32.totalorder %s548, 1
        %s552 = scalar_select %p551, %s548, 1
        %s553 = smul.addr %s550, 4
        %s554 = sadd.s32 %s552, %s553
        %s555 = smul.addr %s554, 8
        %s556 = scalar_lea.vmem %s3, %s555
        // Predicated region
        $region37: #{dense_affine_3d_grid_gen_rotate.1} parent=31 // pred_check
          %p557 = pneg %p122
        $region38: #{dense_affine_3d_grid_gen_rotate.1} parent=31 // pred_check_branch
          %559 = sbr.rel (%p557) target = $region40
        $region39: #{dense_affine_3d_grid_gen_rotate.1} parent=31 // pred_region
          %s560 = smul.u32 2, %s19
        $region40: #{dense_affine_3d_grid_gen_rotate.1} parent=31 // pred_fallthru
          _
      $region32: #{dense_affine_3d_grid_gen_rotate.1} parent=5 // pred_fallthru
        _
      %p561 = scmp.le.s32.totalorder 2, %s10
      // Predicated region
      $region41: #{dense_affine_3d_grid_gen_rotate.1} parent=5 // pred_check
        %p562 = pneg %p561
      $region42: #{dense_affine_3d_grid_gen_rotate.1} parent=5 // pred_check_branch
        %564 = sbr.rel (%p562) target = $region44
      $region43: #{dense_affine_3d_grid_gen_rotate.1} parent=5 // pred_region
        %s565 = ssub.s32 %s10, 2
        // Predicated region
        $region45: #{dense_affine_3d_grid_gen_rotate.1} parent=43 // pred_check
          %p566 = pneg %p128
        $region46: #{dense_affine_3d_grid_gen_rotate.1} parent=43 // pred_check_branch
          %568 = sbr.rel (%p566) target = $region48
        $region47: #{dense_affine_3d_grid_gen_rotate.1} parent=43 // pred_region
          %s569 = smul.u32 2, %s21
          %p570 = scmp.lt.s32.totalorder %s22, 1
          %s571 = scalar_select %p570, %s22, 1
          %p572 = scmp.lt.s32.totalorder %s569, 1
          %s573 = scalar_select %p572, %s569, 1
          %s574 = smul.addr %s571, 4
          %s575 = sadd.s32 %s573, %s574
          %s576 = smul.addr %s575, 8
          %s577 = scalar_lea.vmem %s3, %s576
        $region48: #{dense_affine_3d_grid_gen_rotate.1} parent=43 // pred_fallthru
          _
      $region44: #{dense_affine_3d_grid_gen_rotate.1} parent=5 // pred_fallthru
        _
    $region6: #{dense_affine_3d_grid_gen_rotate.1} parent=1 // loop_footer
      %s14 = sadd.s32 1, %s10
    $region7: #{dense_affine_3d_grid_gen_rotate.1} parent=1 // loop_footer_branch
      %9 = sbr.rel target = $region3
    $region8: #{dense_affine_3d_grid_gen_rotate.1} parent=1 // loop_exit
      _
    %578 = vsyncpa [#allocation3], 1
    %s579 = scalar_lea.sflag [#allocation3], 1
    %580 = vsyncpa %s579, 1

</llo_original>
